<compile_context>
chip_gen: v7x
topology: tpu7x:2x2x1
jax: 0.10.0
libtpu: 0.0.40
codegen_flags: <defaults>
</compile_context>

<pallas_src>
import jax
import jax.numpy as jnp
from jax.experimental import pallas as pl
from jax.experimental.pallas import tpu as pltpu


_LANE = 128
_FALLBACK_VMEM_CAPACITY = 64 << 20  # assume the smallest real chip (v7x) if the query fails


def _vmem_capacity_bytes():
    try:
        return int(pltpu.get_tpu_info().vmem_capacity_bytes)
    except Exception:
        return _FALLBACK_VMEM_CAPACITY


def _vmem_limit_bytes():
    # Explicit scoped-VMEM limit at 7/8 of physical (v5e default is only 16 MiB,
    # so keeping an explicit limit matters; we just size it per generation now).
    return (_vmem_capacity_bytes() * 7) // 8


def _tile_vmem_budget():
    # Bytes available to the 4 live tiles (double-buffered input + output).
    return (_vmem_capacity_bytes() * 3) // 4


def _min_sublane_multiple(dtype):
    nbytes = jnp.dtype(dtype).itemsize
    if nbytes >= 4:
        return 8
    if nbytes == 2:
        return 16
    return 32


def _identity_kernel(x_ref, o_ref):
    # Pure pass-through: whole-tile load + store (HBM -> VMEM -> HBM).
    o_ref[...] = x_ref[...]


def _choose_tiles_2d(rows, cols, dtype):
    """Pick (tile_r, tile_c) for a (rows, cols) streaming copy."""
    itemsize = jnp.dtype(dtype).itemsize
    sub = _min_sublane_multiple(dtype)
    tile_budget = _tile_vmem_budget() // 4  # double-buffered input + output tiles

    # Lane (column) tile: full width when a sublane-minimum tile fits the
    # budget; otherwise tile the lane axis too (multiple of 128) so the
    # wide-row degenerate case cannot overflow VMEM.
    if cols * itemsize * sub <= tile_budget:
        tile_c = cols
    else:
        fit_c = tile_budget // (sub * itemsize)
        tile_c = max(_LANE, (fit_c // _LANE) * _LANE)
        tile_c = min(tile_c, cols)

    # Sublane (row) tile: as big as the budget allows ...
    fit_r = tile_budget // max(1, tile_c * itemsize)
    tile_r = max(sub, (fit_r // sub) * sub)
    if tile_r >= rows:
        if rows > sub:
            # ... but keep >= 2 grid steps so ("parallel", ...) actually splits
            # work across v7x's two TensorCores and the DMA pipeline stays
            # double-buffered instead of collapsing to a single block.
            tile_r = pl.cdiv(pl.cdiv(rows, 2), sub) * sub
        else:
            tile_r = rows
    tile_r = min(tile_r, rows)

    # Snap the row tile to a divisor of rows when cheaply possible so the last
    # grid step is not a ragged block of masked partial stores.
    if 0 < tile_r < rows and rows % tile_r != 0:
        steps = pl.cdiv(rows, tile_r)
        for k in range(steps, steps + 8):
            if rows % k == 0 and (rows // k) % sub == 0:
                tile_r = rows // k
                break
    return tile_r, tile_c


def _identity_pallas_2d(x2d):
    rows, cols = x2d.shape
    tile_r, tile_c = _choose_tiles_2d(rows, cols, x2d.dtype)
    grid = (pl.cdiv(rows, tile_r), pl.cdiv(cols, tile_c))
    return pl.pallas_call(
        _identity_kernel,
        out_shape=jax.ShapeDtypeStruct((rows, cols), x2d.dtype),
        grid=grid,
        in_specs=[pl.BlockSpec((tile_r, tile_c), lambda i, j: (i, j))],
        out_specs=pl.BlockSpec((tile_r, tile_c), lambda i, j: (i, j)),
        compiler_params=pltpu.CompilerParams(
            dimension_semantics=("parallel", "parallel"),
            vmem_limit_bytes=_vmem_limit_bytes(),
        ),
    )(x2d)


def _identity_pallas_full_block(x2d):
    """Single whole-array block: block_shape == array dims bypasses (8,128)."""
    return pl.pallas_call(
        _identity_kernel,
        out_shape=jax.ShapeDtypeStruct(x2d.shape, x2d.dtype),
        compiler_params=pltpu.CompilerParams(
            vmem_limit_bytes=_vmem_limit_bytes(),
        ),
    )(x2d)


@jax.jit
def _identity_pallas_nchw(x_nchw):
    """Route an NCHW tensor through the identity Pallas kernel.

    Prefers a 2-D (rows, cols) layout whose lane axis is a dense multiple of
    128 (unmasked full-width stores).  Lane-sparse shapes are handled without
    any pad/slice passes: one full-array block when it fits VMEM, otherwise
    batch-axis tiling with full trailing dims (only a genuine ragged tail is
    masked by Pallas).
    """
    n, c, h, w = x_nchw.shape
    hw = h * w
    itemsize = jnp.dtype(x_nchw.dtype).itemsize

    if hw % _LANE == 0:
        y2d = _identity_pallas_2d(x_nchw.reshape(n * c, hw))
        return y2d.reshape(n, c, h, w)
    if (c * hw) % _LANE == 0:
        y2d = _identity_pallas_2d(x_nchw.reshape(n, c * hw))
        return y2d.reshape(n, c, h, w)

    # Lane-sparse shape (neither H*W nor C*H*W is a multiple of 128).
    total_bytes = n * c * hw * itemsize
    if 4 * total_bytes <= _tile_vmem_budget():
        y2d = _identity_pallas_full_block(x_nchw.reshape(n * c * h, w))
        return y2d.reshape(n, c, h, w)

    # Too big for one block: tile the batch axis, keep (C, H, W) whole so the
    # trailing block dims equal the array dims (legal without any padding).
    per_item = c * hw * itemsize
    tile_n = max(1, min(n, (_tile_vmem_budget() // 4) // max(1, per_item)))
    if tile_n >= n and n > 1:
        tile_n = pl.cdiv(n, 2)  # keep >= 2 grid steps when possible
    grid = (pl.cdiv(n, tile_n),)
    return pl.pallas_call(
        _identity_kernel,
        out_shape=jax.ShapeDtypeStruct((n, c, h, w), x_nchw.dtype),
        grid=grid,
        in_specs=[pl.BlockSpec((tile_n, c, h, w), lambda i: (i, 0, 0, 0))],
        out_specs=pl.BlockSpec((tile_n, c, h, w), lambda i: (i, 0, 0, 0)),
        compiler_params=pltpu.CompilerParams(
            dimension_semantics=("parallel",),
            vmem_limit_bytes=_vmem_limit_bytes(),
        ),
    )(x_nchw)


class BaseVAE:
    """JAX/Pallas mirror of the PyTorch BaseVAE abstract base class."""

    def __init__(self, input_channels, latent_dim):
        self.input_channels = input_channels
        self.latent_dim = latent_dim
        self.training = True
        # BaseVAE defines no parameters in __init__; nothing to initialize.

    def encode(self, x):
        # TODO(synk): abstract in the reference; subclasses supply the encoder
        # kernel (reuse the tiled scaffold above; plan f32 MXU accumulation).
        raise NotImplementedError

    def decode(self, z):
        # TODO(synk): abstract in the reference; subclasses supply the decoder.
        raise NotImplementedError

    def forward(self, x):
        # Reference forward body is `pass` -> returns None. Reproduced exactly.
        return None

    def identity_pallas(self, x_nchw):
        """Pass-through Pallas scaffold: (N, C, H, W) -> identical array."""
        return _identity_pallas_nchw(x_nchw)


if __name__ == "__main__":
    key = jax.random.PRNGKey(0)
    # Small shapes consistent with a VAE input: batch=2, channels=4, spatial=16.
    x = jax.random.normal(key, (2, 4, 16, 16), dtype=jnp.float32)

    model = BaseVAE(input_channels=4, latent_dim=32)

    # forward() semantics: no-op, returns None (matches the PyTorch reference).
    out = model.forward(x)
    assert out is None

    # Run the Pallas pass-through kernel once and validate (lane-dense path).
    y = model.identity_pallas(x)
    y = jax.block_until_ready(y)
    assert y.shape == x.shape and y.dtype == x.dtype
    assert bool(jnp.all(y == x))

    # Exercise the lane-sparse path too (H*W and C*H*W not % 128): now a
    # single full-array block, no pad/slice passes.
    x_odd = jax.random.normal(key, (2, 3, 5, 7), dtype=jnp.float32)
    y_odd = jax.block_until_ready(model.identity_pallas(x_odd))
    assert y_odd.shape == x_odd.shape
    assert bool(jnp.all(y_odd == x_odd))

    # encode/decode must stay abstract.
    for fn, arg in ((model.encode, x), (model.decode, x)):
        try:
            fn(arg)
            raise AssertionError("expected NotImplementedError")
        except NotImplementedError:
            pass

    print("KERNEL_OK")
</pallas_src>

<mosaic_0001>
module attributes {stable_mosaic.version = 11 : i64} {
  func.func @_identity_kernel(%arg0: i32, %arg1: i32, %arg2: memref<8x256xf32, #tpu.memory_space<vmem>>, %arg3: memref<8x256xf32, #tpu.memory_space<vmem>>) attributes {dimension_semantics = [#tpu.dimension_semantics<parallel>, #tpu.dimension_semantics<parallel>], iteration_bounds = array<i64: 1, 1>, scalar_prefetch = 0 : i64, scratch_operands = 0 : i64, tpu.core_type = #tpu.core_type<tc>, window_params = [{transform_indices = @transform_0, window_bounds = array<i64: 8, 256>}, {transform_indices = @transform_1, window_bounds = array<i64: 8, 256>}]} {
    %c0 = arith.constant 0 : index
    %c0_0 = arith.constant 0 : index
    %0 = vector.load %arg2[%c0, %c0_0] : memref<8x256xf32, #tpu.memory_space<vmem>>, vector<8x256xf32>
    %c0_1 = arith.constant 0 : index
    %c0_2 = arith.constant 0 : index
    %1 = vector.load %arg3[%c0_1, %c0_2] : memref<8x256xf32, #tpu.memory_space<vmem>>, vector<8x256xf32>
    tpu.vector_store %arg3[%c0_1, %c0_2], %0 {strides = array<i32>} : memref<8x256xf32, #tpu.memory_space<vmem>>, vector<8x256xf32>,
    return
  }
  func.func @transform_0(%arg0: i32, %arg1: i32) -> (i32, i32) {
    %c0_i32 = arith.constant 0 : i32
    return %arg0, %arg1 : i32, i32
  }
  func.func @transform_1(%arg0: i32, %arg1: i32) -> (i32, i32) {
    %c0_i32 = arith.constant 0 : i32
    return %arg0, %arg1 : i32, i32
  }
}

</mosaic_0001>

<llo_original>
// kernel: _identity_pallas_nchw.1
$region0: #{_identity_pallas_nchw.1}
  #allocation0 [shape = 'u32[]', space=smem, size = 0x4, offset = 0x4, fixed_abs, tag = 'smem constant byte address 0x4 - core index']
  #allocation1 [shape = 'u32[144,128]{1,0:T(1,128)}', space=vmem, size = 0x12000, scoped, tag = 'internal scratch']
  %s0 = inlined_call_operand.vmem [shape: f32[8,256], index: 0, kind: input, shape index: {}]
  %s1 = inlined_call_operand.vmem [shape: f32[8,256], index: 1, kind: output, shape index: {}]
  %s2 = sld [smem:[#allocation0]]
  $region14: #{_identity_pallas_nchw.1} parent=0
    _
  %s4 = ssub.s32 1, %s2
  %s5 = scalar_select 0, %s4, %s2
  // Predicated region
  $region2: #{_identity_pallas_nchw.1} parent=0 // pred_check
    _
  $region3: #{_identity_pallas_nchw.1} parent=0 // pred_check_branch
    %7 = sbr.rel (0) target = $region5
  $region4: #{_identity_pallas_nchw.1} parent=0 // pred_region
    _
  $region5: #{_identity_pallas_nchw.1} parent=0 // pred_fallthru
    _
  %v8 = vld [vmem:[%s0] sm:$0xff]
  %v9 = vld [vmem:[%s0 + $0x8] sm:$0xff]
  %10 = vst [vmem:[%s1] sm:$0xff] %v8
  %11 = vst [vmem:[%s1 + $0x8] sm:$0xff] %v9
  // Predicated region
  $region6: #{_identity_pallas_nchw.1} parent=0 // pred_check
    _
  $region7: #{_identity_pallas_nchw.1} parent=0 // pred_check_branch
    %13 = sbr.rel (0) target = $region9
  $region8: #{_identity_pallas_nchw.1} parent=0 // pred_region
    _
  $region9: #{_identity_pallas_nchw.1} parent=0 // pred_fallthru
    _
  // Predicated region
  $region10: #{_identity_pallas_nchw.1} parent=0 // pred_check
    _
  $region11: #{_identity_pallas_nchw.1} parent=0 // pred_check_branch
    %15 = sbr.rel (0) target = $region13
  $region12: #{_identity_pallas_nchw.1} parent=0 // pred_region
    _
  $region13: #{_identity_pallas_nchw.1} parent=0 // pred_fallthru
    _

</llo_original>
